<compile_context>
chip_gen: v7x
topology: tpu7x:2x2x1
jax: 0.10.0
libtpu: 0.0.40
codegen_flags: <defaults>
</compile_context>

<pallas_src>
import functools

import jax
import jax.numpy as jnp
from jax import lax
from jax.experimental import pallas as pl
from jax.experimental.pallas import tpu as pltpu

LANES = 128
SUBLANES = 8


def _round_up(x, m):
    return ((x + m - 1) // m) * m


def _cdiv(a, b):
    return -(-a // b)


def _largest_divisor_leq(n, cap):
    cap = max(1, min(n, cap))
    for d in range(cap, 0, -1):
        if n % d == 0:
            return d
    return 1


def _vmem_budget():
    """Per-generation (per-input block byte budget, scoped-VMEM limit)."""
    vmem = None
    try:
        info = pltpu.get_tpu_info()
        vmem = getattr(info, "vmem_capacity_bytes", None)
    except Exception:
        vmem = None
    if vmem is None:
        # Unknown chip: conservative, known-good settings.
        return 2 * 1024 * 1024, 32 * 1024 * 1024
    if vmem >= 100 * 1024 * 1024:          # v5e / v6e: 128 MiB physical VMEM
        return 8 * 1024 * 1024, 80 * 1024 * 1024
    if vmem >= 48 * 1024 * 1024:           # v7x: 64 MiB physical VMEM
        return 4 * 1024 * 1024, 48 * 1024 * 1024
    return 2 * 1024 * 1024, min(int(vmem), 32 * 1024 * 1024)


def _choose_tiles(n, k, hw, ebytes, mask_ebytes, budget, vmem_limit):
    """Pick (TN images per block, THW spatial lanes per block, #spatial blocks)."""
    sub = max(1, 32 // max(ebytes, 1))          # sublane packing of input dtype
    k_pad = _round_up(k, sub)
    lane_hw = _round_up(hw, LANES)
    plane_bytes = k_pad * lane_hw * ebytes      # one image's (K, HW) block in VMEM
    if plane_bytes <= budget:
        # Whole plane fits: batch images per step, keeping total VMEM
        # (double-buffered pred/gt/mask + small scratch/out blocks) in check.
        small = _round_up(k, SUBLANES) * LANES * 4
        mask_plane = SUBLANES * lane_hw * mask_ebytes
        per_img = 2 * plane_bytes + mask_plane + 4 * small
        tn_cap = min(budget // plane_bytes, max(1, vmem_limit // (3 * per_img)))
        tn = _largest_divisor_leq(n, tn_cap)    # TN | N so no ragged image blocks
        return tn, hw, 1
    # Plane too big: one image per block, tile the spatial axis (lane-aligned).
    thw = max(LANES, (budget // (k_pad * ebytes)) // LANES * LANES)
    thw = min(thw, lane_hw)
    return 1, thw, _cdiv(hw, thw)


def _heatmap_loss_kernel(pred_ref, gt_ref, mask_ref, *rest,
                         hw, thw, need_gsum, need_tail_mask):
    if need_gsum:
        sse_out_ref, gsum_out_ref, acc_ref, gacc_ref = rest
    else:
        sse_out_ref, acc_ref = rest
        gsum_out_ref = gacc_ref = None

    pi = pl.program_id(1)            # spatial half (parallel)
    ji = pl.program_id(2)            # spatial tile within the half (reduction)
    num_j = pl.num_programs(2)

    @pl.when(ji == 0)
    def _():
        acc_ref[...] = jnp.zeros_like(acc_ref)
        if need_gsum:
            gacc_ref[...] = jnp.zeros_like(gacc_ref)

    pred = pred_ref[...].astype(jnp.float32)     # (TN, K, THW)
    gt = gt_ref[...].astype(jnp.float32)         # (TN, K, THW)
    m = mask_ref[...].astype(jnp.float32)        # (TN, 1, THW)

    diff = pred - gt
    sq = diff * diff * m                         # (TN, K, THW), pure VPU filler

    if need_tail_mask:
        # Zero out lanes past the true H*W (ragged last tile and phantom
        # blocks beyond the last spatial tile).  where() selects, so garbage
        # (even NaN/Inf) in the unspecified tail never reaches the sums.
        lane = lax.broadcasted_iota(jnp.int32, (1, 1, thw), 2)
        pos = (pi * num_j + ji) * thw + lane     # global spatial element index
        valid = pos < hw
        sq = jnp.where(valid, sq, 0.0)
        if need_gsum:
            gt = jnp.where(valid, gt, 0.0)

    # Tiny accumulators: per-(image, channel) partial sums only.
    acc_ref[...] += jnp.sum(sq, axis=2, keepdims=True)        # (TN, K, 1)
    if need_gsum:
        gacc_ref[...] += jnp.sum(gt, axis=2, keepdims=True)   # (TN, K, 1)

    @pl.when(ji == num_j - 1)
    def _():
        sse_out_ref[...] = acc_ref[...].reshape(sse_out_ref.shape)
        if need_gsum:
            gsum_out_ref[...] = gacc_ref[...].reshape(gsum_out_ref.shape)


def heatmap_loss(pred, gt, mask, supervise_empty=True, max_block_bytes=None):
    """Pallas forward of HeatmapLoss.

    Args:
      pred: (N, K, H, W) predicted heatmaps.
      gt:   (N, K, H, W) target heatmaps.
      mask: (N, H, W) valid-pixel mask.
      supervise_empty: whether empty gt channels contribute to the loss.
      max_block_bytes: optional override of the per-input block budget (tests).
    Returns:
      (N,) per-image loss (float32), matching the PyTorch module's forward.
    """
    n, k, h, w = pred.shape
    assert gt.shape == pred.shape, (pred.shape, gt.shape)
    assert mask.shape == (n, h, w), mask.shape
    hw = h * w

    ebytes = max(jnp.dtype(pred.dtype).itemsize, jnp.dtype(gt.dtype).itemsize)
    mask_ebytes = jnp.dtype(mask.dtype).itemsize
    budget, vmem_limit = _vmem_budget()
    if max_block_bytes is not None:
        budget = int(max_block_bytes)

    tn, thw, num_sp = _choose_tiles(n, k, hw, ebytes, mask_ebytes,
                                    budget, vmem_limit)
    num_nblk = n // tn

    # 2-way "parallel" spatial split keeps both TensorCores busy (v7x) when
    # the image-block axis alone cannot (N=1 / all images in one block).
    if num_nblk >= 2:
        p, num_j = 1, num_sp
    elif num_sp >= 2:
        p, num_j = 2, _cdiv(num_sp, 2)
    else:
        thw2 = _round_up(_cdiv(hw, 2), LANES)
        if thw2 < hw:
            thw = thw2
            num_sp = _cdiv(hw, thw)
            p, num_j = 2, _cdiv(num_sp, 2)
        else:
            p, num_j = 1, 1

    need_clamp = p * num_j > num_sp               # phantom (fully OOB) tiles exist
    need_tail_mask = p * num_j * thw != hw        # any lane past true H*W
    need_gsum = not supervise_empty

    pred3 = pred.reshape(n, k, hw)
    gt3 = gt.reshape(n, k, hw)
    mask3 = mask.reshape(n, 1, hw)

    if need_clamp:
        def in_map(ni, pi, ji):
            return (ni, 0, jnp.minimum(pi * num_j + ji, num_sp - 1))
    else:
        def in_map(ni, pi, ji):
            return (ni, 0, pi * num_j + ji)

    def out_map(ni, pi, ji):
        return (ni, pi, 0, 0)

    in_specs = [
        pl.BlockSpec((tn, k, thw), in_map),       # pred
        pl.BlockSpec((tn, k, thw), in_map),       # gt
        pl.BlockSpec((tn, 1, thw), in_map),       # mask (broadcast over K)
    ]
    out_shapes = [jax.ShapeDtypeStruct((n, p, k, 1), jnp.float32)]
    out_specs = [pl.BlockSpec((tn, 1, k, 1), out_map)]
    scratch = [pltpu.VMEM((tn, k, 1), jnp.float32)]
    if need_gsum:
        out_shapes.append(jax.ShapeDtypeStruct((n, p, k, 1), jnp.float32))
        out_specs.append(pl.BlockSpec((tn, 1, k, 1), out_map))
        scratch.append(pltpu.VMEM((tn, k, 1), jnp.float32))

    kernel = functools.partial(
        _heatmap_loss_kernel,
        hw=hw, thw=thw,
        need_gsum=need_gsum, need_tail_mask=need_tail_mask)

    outs = pl.pallas_call(
        kernel,
        out_shape=tuple(out_shapes),
        grid_spec=pltpu.PrefetchScalarGridSpec(
            num_scalar_prefetch=0,
            grid=(num_nblk, p, num_j),
            in_specs=in_specs,
            out_specs=list(out_specs),
            scratch_shapes=scratch,
        ),
        compiler_params=pltpu.CompilerParams(
            dimension_semantics=("parallel", "parallel", "arbitrary"),
            vmem_limit_bytes=vmem_limit,
        ),
    )(pred3, gt3, mask3)

    if not isinstance(outs, (tuple, list)):
        outs = (outs,)

    inv_norm = 1.0 / float(k * h * w)             # mean over (K, H, W)
    sse = jnp.sum(outs[0][:, :, :, 0], axis=1)    # (N, K): combine spatial halves
    if need_gsum:
        gsum = jnp.sum(outs[1][:, :, :, 0], axis=1)
        sse = sse * (gsum > 0).astype(jnp.float32)
    return jnp.sum(sse, axis=1) * inv_norm


def _reference(pred, gt, mask, supervise_empty=True):
    """Pure-JAX transcription of the PyTorch HeatmapLoss.forward."""
    loss = (pred - gt) ** 2 * mask[:, None, :, :]
    if not supervise_empty:
        empty = (jnp.sum(gt, axis=(2, 3), keepdims=True) > 0).astype(pred.dtype)
        loss = loss * empty
    return loss.mean(axis=3).mean(axis=2).mean(axis=1)


def _check(pred, gt, mask, **kw):
    for se in (True, False):
        out = jax.block_until_ready(
            heatmap_loss(pred, gt, mask, supervise_empty=se, **kw))
        ref = _reference(pred, gt, mask, supervise_empty=se)
        assert out.shape == ref.shape, (out.shape, ref.shape)
        assert jnp.allclose(out, ref, rtol=1e-5, atol=1e-5), (se, out, ref)


if __name__ == "__main__":
    # Case 1: canonical small shape (N=2, K=4, 16x16); exercises image batching
    # plus the 2-way parallel spatial split (single image block).
    k1, k2, k3 = jax.random.split(jax.random.PRNGKey(0), 3)
    N, K, H, W = 2, 4, 16, 16
    pred = jax.random.normal(k1, (N, K, H, W), dtype=jnp.float32)
    gt = jax.nn.relu(jax.random.normal(k2, (N, K, H, W), dtype=jnp.float32))
    gt = gt.at[0, 1].set(0.0)   # one empty channel for supervise_empty=False
    mask = (jax.random.uniform(k3, (N, H, W)) > 0.3).astype(jnp.float32)
    _check(pred, gt, mask)

    # Case 2: N=1, ragged H*W (360, not a multiple of 128) with a tiny forced
    # block budget; exercises spatial tiling, the in-kernel tail mask and the
    # phantom-block clamp of the 2-way core split.
    k4, k5, k6 = jax.random.split(jax.random.PRNGKey(1), 3)
    N2, K2, H2, W2 = 1, 5, 12, 30
    pred2 = jax.random.normal(k4, (N2, K2, H2, W2), dtype=jnp.float32)
    gt2 = jax.nn.relu(jax.random.normal(k5, (N2, K2, H2, W2), dtype=jnp.float32))
    gt2 = gt2.at[0, 2].set(0.0)
    mask2 = (jax.random.uniform(k6, (N2, H2, W2)) > 0.3).astype(jnp.float32)
    _check(pred2, gt2, mask2, max_block_bytes=4096)

    # Case 3: multiple image blocks (TN=2 of N=4) via a small forced budget.
    k7, k8, k9 = jax.random.split(jax.random.PRNGKey(2), 3)
    N3, K3, H3, W3 = 4, 3, 8, 16
    pred3 = jax.random.normal(k7, (N3, K3, H3, W3), dtype=jnp.float32)
    gt3 = jax.nn.relu(jax.random.normal(k8, (N3, K3, H3, W3), dtype=jnp.float32))
    mask3 = (jax.random.uniform(k9, (N3, H3, W3)) > 0.3).astype(jnp.float32)
    _check(pred3, gt3, mask3, max_block_bytes=8192)

    print("KERNEL_OK")
</pallas_src>

<mosaic_0001>
module attributes {stable_mosaic.version = 11 : i64} {
  func.func @_heatmap_loss_kernel(%arg0: i32, %arg1: i32, %arg2: i32, %arg3: memref<2x4x128xf32, #tpu.memory_space<vmem>>, %arg4: memref<2x4x128xf32, #tpu.memory_space<vmem>>, %arg5: memref<2x1x128xf32, #tpu.memory_space<vmem>>, %arg6: memref<2x1x4x1xf32, #tpu.memory_space<vmem>>, %arg7: memref<2x4x1xf32, #tpu.memory_space<vmem>>) attributes {dimension_semantics = [#tpu.dimension_semantics<parallel>, #tpu.dimension_semantics<parallel>, #tpu.dimension_semantics<arbitrary>], iteration_bounds = array<i64: 1, 2, 1>, scalar_prefetch = 0 : i64, scratch_operands = 1 : i64, tpu.core_type = #tpu.core_type<tc>, window_params = [{transform_indices = @transform_0, window_bounds = array<i64: 2, 4, 128>}, {transform_indices = @transform_1, window_bounds = array<i64: 2, 4, 128>}, {transform_indices = @transform_2, window_bounds = array<i64: 2, 1, 128>}, {transform_indices = @transform_3, window_bounds = array<i64: 2, 1, 4, 1>}]} {
    %c0_i32 = arith.constant 0 : i32
    %0 = arith.cmpi eq, %arg2, %c0_i32 : i32
    %1 = arith.extui %0 : i1 to i32
    %c0_i32_0 = arith.constant 0 : i32
    %2 = arith.cmpi ne, %1, %c0_i32_0 : i32
    scf.if %2 {
      %cst_17 = arith.constant 0.000000e+00 : f32
      %18 = vector.broadcast %cst_17 : f32 to vector<2x4x1xf32>
      %c0_18 = arith.constant 0 : index
      %c0_19 = arith.constant 0 : index
      %c0_20 = arith.constant 0 : index
      %19 = vector.load %arg7[%c0_18, %c0_19, %c0_20] : memref<2x4x1xf32, #tpu.memory_space<vmem>>, vector<2x4x1xf32>
      tpu.vector_store %arg7[%c0_18, %c0_19, %c0_20], %18 {strides = array<i32>} : memref<2x4x1xf32, #tpu.memory_space<vmem>>, vector<2x4x1xf32>,
    } else {
    }
    %c0 = arith.constant 0 : index
    %c0_1 = arith.constant 0 : index
    %c0_2 = arith.constant 0 : index
    %3 = vector.load %arg3[%c0, %c0_1, %c0_2] : memref<2x4x128xf32, #tpu.memory_space<vmem>>, vector<2x4x128xf32>
    %c0_3 = arith.constant 0 : index
    %c0_4 = arith.constant 0 : index
    %c0_5 = arith.constant 0 : index
    %4 = vector.load %arg4[%c0_3, %c0_4, %c0_5] : memref<2x4x128xf32, #tpu.memory_space<vmem>>, vector<2x4x128xf32>
    %c0_6 = arith.constant 0 : index
    %c0_7 = arith.constant 0 : index
    %c0_8 = arith.constant 0 : index
    %5 = vector.load %arg5[%c0_6, %c0_7, %c0_8] : memref<2x1x128xf32, #tpu.memory_space<vmem>>, vector<2x1x128xf32>
    %6 = arith.subf %3, %4 : vector<2x4x128xf32>
    %7 = arith.mulf %6, %6 : vector<2x4x128xf32>
    %8 = vector.broadcast %5 : vector<2x1x128xf32> to vector<2x4x128xf32>
    %9 = arith.mulf %7, %8 : vector<2x4x128xf32>
    %c0_9 = arith.constant 0 : index
    %c0_10 = arith.constant 0 : index
    %c0_11 = arith.constant 0 : index
    %10 = vector.load %arg7[%c0_9, %c0_10, %c0_11] : memref<2x4x1xf32, #tpu.memory_space<vmem>>, vector<2x4x1xf32>
    %cst = arith.constant dense<0.000000e+00> : vector<2x4xf32>
    %11 = vector.multi_reduction <add>, %9, %cst [2] : vector<2x4x128xf32> to vector<2x4xf32>
    %12 = vector.shape_cast %11 : vector<2x4xf32> to vector<2x4x1xf32>
    %13 = arith.addf %10, %12 : vector<2x4x1xf32>
    %c0_12 = arith.constant 0 : index
    %c0_13 = arith.constant 0 : index
    %c0_14 = arith.constant 0 : index
    %14 = vector.load %arg7[%c0_12, %c0_13, %c0_14] : memref<2x4x1xf32, #tpu.memory_space<vmem>>, vector<2x4x1xf32>
    tpu.vector_store %arg7[%c0_12, %c0_13, %c0_14], %13 {strides = array<i32>} : memref<2x4x1xf32, #tpu.memory_space<vmem>>, vector<2x4x1xf32>,
    %c0_i32_15 = arith.constant 0 : i32
    %15 = arith.cmpi eq, %arg2, %c0_i32_15 : i32
    %16 = arith.extui %15 : i1 to i32
    %c0_i32_16 = arith.constant 0 : i32
    %17 = arith.cmpi ne, %16, %c0_i32_16 : i32
    scf.if %17 {
      %c0_17 = arith.constant 0 : index
      %c0_18 = arith.constant 0 : index
      %c0_19 = arith.constant 0 : index
      %18 = vector.load %arg7[%c0_17, %c0_18, %c0_19] : memref<2x4x1xf32, #tpu.memory_space<vmem>>, vector<2x4x1xf32>
      %19 = vector.shape_cast %18 : vector<2x4x1xf32> to vector<2x1x4x1xf32>
      %c0_20 = arith.constant 0 : index
      %c0_21 = arith.constant 0 : index
      %c0_22 = arith.constant 0 : index
      %c0_23 = arith.constant 0 : index
      %20 = vector.load %arg6[%c0_20, %c0_21, %c0_22, %c0_23] : memref<2x1x4x1xf32, #tpu.memory_space<vmem>>, vector<2x1x4x1xf32>
      tpu.vector_store %arg6[%c0_20, %c0_21, %c0_22, %c0_23], %19 {strides = array<i32>} : memref<2x1x4x1xf32, #tpu.memory_space<vmem>>, vector<2x1x4x1xf32>,
    } else {
    }
    return
  }
  func.func @transform_0(%arg0: i32, %arg1: i32, %arg2: i32) -> (i32, i32, i32) {
    %c1_i32 = arith.constant 1 : i32
    %0 = arith.muli %arg1, %c1_i32 : i32
    %1 = arith.addi %0, %arg2 : i32
    %c0_i32 = arith.constant 0 : i32
    %c0_i32_0 = arith.constant 0 : i32
    return %arg0, %c0_i32, %1 : i32, i32, i32
  }
  func.func @transform_1(%arg0: i32, %arg1: i32, %arg2: i32) -> (i32, i32, i32) {
    %c1_i32 = arith.constant 1 : i32
    %0 = arith.muli %arg1, %c1_i32 : i32
    %1 = arith.addi %0, %arg2 : i32
    %c0_i32 = arith.constant 0 : i32
    %c0_i32_0 = arith.constant 0 : i32
    return %arg0, %c0_i32, %1 : i32, i32, i32
  }
  func.func @transform_2(%arg0: i32, %arg1: i32, %arg2: i32) -> (i32, i32, i32) {
    %c1_i32 = arith.constant 1 : i32
    %0 = arith.muli %arg1, %c1_i32 : i32
    %1 = arith.addi %0, %arg2 : i32
    %c0_i32 = arith.constant 0 : i32
    %c0_i32_0 = arith.constant 0 : i32
    return %arg0, %c0_i32, %1 : i32, i32, i32
  }
  func.func @transform_3(%arg0: i32, %arg1: i32, %arg2: i32) -> (i32, i32, i32, i32) {
    %c0_i32 = arith.constant 0 : i32
    %c0_i32_0 = arith.constant 0 : i32
    %c0_i32_1 = arith.constant 0 : i32
    return %arg0, %arg1, %c0_i32, %c0_i32_0 : i32, i32, i32, i32
  }
}

</mosaic_0001>

<llo_original>
// kernel: tpu_custom_call.1
$region0: #{tpu_custom_call.1}
  #allocation0 [shape = 'u32[]', space=smem, size = 0x4, offset = 0x4, fixed_abs, tag = 'smem constant byte address 0x4 - core index']
  #allocation1 [shape = 'u32[144,128]{1,0:T(1,128)}', space=vmem, size = 0x12000, scoped, tag = 'internal scratch']
  #allocation2 [shape = 'f32[2,4,1]{2,1,0:T(4,128)}', space=vmem, size = 0x1000, scoped, tag = 'scratch operand']
  %s0 = inlined_call_operand.hbm [shape: f32[2,4,256], index: 0, kind: input, shape index: {}]
  %s1 = inlined_call_operand.hbm [shape: f32[2,4,256], index: 1, kind: input, shape index: {}]
  %s2 = inlined_call_operand.vmem [shape: f32[2,1,256], index: 2, kind: input, shape index: {}]
  %s3 = inlined_call_operand.vmem [shape: f32[2,2,4,1], index: 3, kind: output, shape index: {}]
  %s4 = sld [smem:[#allocation0]]
  $region132: #{tpu_custom_call.1} parent=0
    _
  %s6 = ssub.s32 1, %s4
  %s7 = scalar_select 0, %s6, %s4
  $region1: #{tpu_custom_call.1} parent=0
    #allocation3 [shape = 'u8[8192]{0}', space=vmem, size = 0x2000, scoped, tag = 'input window, operand 0']
    #allocation4 [shape = 's32[2]{0}', space=sflag, size = 0x8, scoped, tag = 'scoped memory for tpu_custom_call.1']
    #allocation5 [shape = 'u8[8192]{0}', space=vmem, size = 0x2000, scoped, tag = 'input window, operand 1']
    #allocation6 [shape = 's32[2]{0}', space=sflag, size = 0x8, scoped, tag = 'scoped memory for tpu_custom_call.1']
    #allocation7 [shape = 'u8[2048]{0}', space=vmem, size = 0x800, scoped, tag = 'input window, operand 2']
    #allocation8 [shape = 'u8[8192]{0}', space=vmem, size = 0x2000, scoped, tag = 'output window, operand 0']
    %8 = vsyncpa [#allocation4], 0
    %s9 = scalar_lea.sflag [#allocation4], 1
    %10 = vsyncpa %s9, 0
    %11 = vsyncpa [#allocation6], 0
    %s12 = scalar_lea.sflag [#allocation6], 1
    %13 = vsyncpa %s12, 0
    loop: start=0, step=1, limit=4
    $region2: #{tpu_custom_call.1} parent=1 // loop_pre_header
      _
    $region3: #{tpu_custom_call.1} parent=1 // loop_header
      %s15 = sphi 0, %s19
      %p16 = scmp.ge.s32.totalorder %s15, 4
      %s22 = sphi 0, %s41
      %s23 = sphi 0, %s37
      %s24 = sphi 0, %s33
      %s25 = sphi 0, %s22
      %s26 = sphi 0, %s23
      %s27 = sphi 0, %s24
      %s28 = sphi 0, %s25
      %s29 = sphi 0, %s26
      %s30 = sphi 0, %s27
      %s48 = sphi 0, %s50
      %s51 = sphi 0, %s48
      %s52 = sphi 0, %s51
      %s68 = sphi 0, %s52
      %s78 = sphi 0, %s80
      %s81 = sphi 0, %s78
      %s82 = sphi 0, %s81
      %s98 = sphi 0, %s82
      %s108 = sphi 0, %s110
      %s111 = sphi 0, %s108
      %s112 = sphi 0, %s111
      %s128 = sphi 0, %s112
      %s136 = sphi 0, %s138
      %s139 = sphi 0, %s136
      %s140 = sphi 0, %s139
      %s156 = sphi 0, %s140
    $region4: #{tpu_custom_call.1} parent=1 // loop_header_branch
      %18 = sbr.rel (%p16) target = $region8
    $region5: #{tpu_custom_call.1} parent=1 // loop_body
      %s20 = ssub.s32 %s15, 1
      %s21 = ssub.s32 %s15, 2
      %s31 = sadd.s32 1, %s24
      %p32 = scmp.ge.s32.totalorder %s31, 1
      %s33 = scalar_select %p32, 0, %s31
      %s34 = sadd.s32 1, %s23
      %s35 = scalar_select %p32, %s34, %s23
      %p36 = scmp.ge.s32.totalorder %s35, 2
      %s37 = scalar_select %p36, 0, %s35
      %s38 = sadd.s32 1, %s22
      %s39 = scalar_select %p36, %s38, %s22
      %p40 = scmp.ge.s32.totalorder %s39, 1
      %s41 = scalar_select %p40, 0, %s39
      %s42 = sadd.s32 %s23, %s24
      %s43 = sadd.s32 %s37, %s33
      %s44 = ssub.s32 %s22, %s41
      %s45 = ssub.s32 %s42, %s43
      %s46 = sor.u32 %s44, %s45
      %p47 = scmp.eq.s32.totalorder %s46, 0
      %s49 = sadd.s32 %s48, 1
      %s50 = scalar_select %p47, %s48, %s49
      %p53 = pneg %p47
      %p54 = scmp.eq.s32.totalorder %s15, 1
      %p55 = por %p53, %p54
      %p56 = scmp.ne.s32.totalorder %s48, %s51
      %p57 = scmp.eq.s32.totalorder %s15, 0
      %p58 = por %p56, %p57
      %p59 = scmp.ne.s32.totalorder %s48, %s51
      %p60 = scmp.eq.s32.totalorder %s20, 1
      %p61 = por %p59, %p60
      %p62 = scmp.ne.s32.totalorder %s51, %s52
      %p63 = scmp.eq.s32.totalorder %s20, 0
      %p64 = por %p62, %p63
      %p65 = scmp.ne.s32.totalorder %s51, %s52
      %p66 = scmp.eq.s32.totalorder %s21, 1
      %p67 = por %p65, %p66
      %p69 = scmp.ne.s32.totalorder %s52, %s68
      %p70 = scmp.eq.s32.totalorder %s21, 0
      %p71 = por %p69, %p70
      %s72 = sadd.s32 %s23, %s24
      %s73 = sadd.s32 %s37, %s33
      %s74 = ssub.s32 %s22, %s41
      %s75 = ssub.s32 %s72, %s73
      %s76 = sor.u32 %s74, %s75
      %p77 = scmp.eq.s32.totalorder %s76, 0
      %s79 = sadd.s32 %s78, 1
      %s80 = scalar_select %p77, %s78, %s79
      %p83 = pneg %p77
      %p84 = scmp.eq.s32.totalorder %s15, 1
      %p85 = por %p83, %p84
      %p86 = scmp.ne.s32.totalorder %s78, %s81
      %p87 = scmp.eq.s32.totalorder %s15, 0
      %p88 = por %p86, %p87
      %p89 = scmp.ne.s32.totalorder %s78, %s81
      %p90 = scmp.eq.s32.totalorder %s20, 1
      %p91 = por %p89, %p90
      %p92 = scmp.ne.s32.totalorder %s81, %s82
      %p93 = scmp.eq.s32.totalorder %s20, 0
      %p94 = por %p92, %p93
      %p95 = scmp.ne.s32.totalorder %s81, %s82
      %p96 = scmp.eq.s32.totalorder %s21, 1
      %p97 = por %p95, %p96
      %p99 = scmp.ne.s32.totalorder %s82, %s98
      %p100 = scmp.eq.s32.totalorder %s21, 0
      %p101 = por %p99, %p100
      %s102 = sadd.s32 %s23, %s24
      %s103 = sadd.s32 %s37, %s33
      %s104 = ssub.s32 %s22, %s41
      %s105 = ssub.s32 %s102, %s103
      %s106 = sor.u32 %s104, %s105
      %p107 = scmp.eq.s32.totalorder %s106, 0
      %s109 = sadd.s32 %s108, 1
      %s110 = scalar_select %p107, %s108, %s109
      %p113 = pneg %p107
      %p114 = scmp.eq.s32.totalorder %s15, 1
      %p115 = por %p113, %p114
      %p116 = scmp.ne.s32.totalorder %s108, %s111
      %p117 = scmp.eq.s32.totalorder %s15, 0
      %p118 = por %p116, %p117
      %p119 = scmp.ne.s32.totalorder %s108, %s111
      %p120 = scmp.eq.s32.totalorder %s20, 1
      %p121 = por %p119, %p120
      %p122 = scmp.ne.s32.totalorder %s111, %s112
      %p123 = scmp.eq.s32.totalorder %s20, 0
      %p124 = por %p122, %p123
      %p125 = scmp.ne.s32.totalorder %s111, %s112
      %p126 = scmp.eq.s32.totalorder %s21, 1
      %p127 = por %p125, %p126
      %p129 = scmp.ne.s32.totalorder %s112, %s128
      %p130 = scmp.eq.s32.totalorder %s21, 0
      %p131 = por %p129, %p130
      %s132 = ssub.s32 %s22, %s41
      %s133 = ssub.s32 %s23, %s37
      %s134 = sor.u32 %s132, %s133
      %p135 = scmp.eq.s32.totalorder %s134, 0
      %s137 = sadd.s32 %s136, 1
      %s138 = scalar_select %p135, %s136, %s137
      %p141 = pneg %p135
      %p142 = scmp.eq.s32.totalorder %s15, 1
      %p143 = por %p141, %p142
      %p144 = scmp.ne.s32.totalorder %s136, %s139
      %p145 = scmp.eq.s32.totalorder %s15, 0
      %p146 = por %p144, %p145
      %p147 = scmp.ne.s32.totalorder %s136, %s139
      %p148 = scmp.eq.s32.totalorder %s20, 1
      %p149 = por %p147, %p148
      %p150 = scmp.ne.s32.totalorder %s139, %s140
      %p151 = scmp.eq.s32.totalorder %s20, 0
      %p152 = por %p150, %p151
      %p153 = scmp.ne.s32.totalorder %s139, %s140
      %p154 = scmp.eq.s32.totalorder %s21, 1
      %p155 = por %p153, %p154
      %p157 = scmp.ne.s32.totalorder %s140, %s156
      %p158 = scmp.eq.s32.totalorder %s21, 0
      %p159 = por %p157, %p158
      %p160 = scmp.le.s32.totalorder 1, %s15
      %p161 = scmp.lt.s32.totalorder %s15, 3
      %p162 = pnand %p160, %p161
      %p163 = pneg %p162
      // Predicated region
      $region9: #{tpu_custom_call.1} parent=5 // pred_check
        _
      $region10: #{tpu_custom_call.1} parent=5 // pred_check_branch
        %165 = sbr.rel (%p162) target = $region12
      $region11: #{tpu_custom_call.1} parent=5 // pred_region
        %s166 = ssub.s32 %s15, 1
      $region12: #{tpu_custom_call.1} parent=5 // pred_fallthru
        _
      %p167 = scmp.lt.s32.totalorder %s15, 2
      // Predicated region
      $region13: #{tpu_custom_call.1} parent=5 // pred_check
        %p168 = pneg %p167
      $region14: #{tpu_custom_call.1} parent=5 // pred_check_branch
        %170 = sbr.rel (%p168) target = $region16
      $region15: #{tpu_custom_call.1} parent=5 // pred_region
        // Predicated region
        $region17: #{tpu_custom_call.1} parent=15 // pred_check
          %p171 = pneg %p58
        $region18: #{tpu_custom_call.1} parent=15 // pred_check_branch
          %173 = sbr.rel (%p171) target = $region20
        $region19: #{tpu_custom_call.1} parent=15 // pred_region
          %s174 = sand.u32 %s48, 1
          %s175 = scalar_lea.sflag [#allocation4], %s174
          %s176 = sand.u32 %s48, 1
          %s177 = smul.addr %s176, 8
          %s178 = scalar_lea.vmem [#allocation3], %s177
          %s179 = sadd.s32 %s23, %s24
          %s180 = smul.u32 2, %s22
          %s182 = ssub.s32 128, 128
          %183 = vsyncadd %s175, %s182
          %s184 = smul.addr %s180, 2
          %s185 = sadd.s32 %s179, %s184
          %s186 = smul.addr %s185, 64
          %s187 = scalar_lea.hbm %s0, %s186
          %s188 = sshll.u32 %s178, 4
          %s189 = int_to_ptr.vmem [resolvable:$true] %s188
          %194 = dma.hbm_to_vmem [thread:$0]  %s187, 128, %s189, %s175, 128, 64, 4
        $region20: #{tpu_custom_call.1} parent=15 // pred_fallthru
          _
        // Predicated region
        $region21: #{tpu_custom_call.1} parent=15 // pred_check
          %p195 = pneg %p88
        $region22: #{tpu_custom_call.1} parent=15 // pred_check_branch
          %197 = sbr.rel (%p195) target = $region24
        $region23: #{tpu_custom_call.1} parent=15 // pred_region
          %s198 = sand.u32 %s78, 1
          %s199 = scalar_lea.sflag [#allocation6], %s198
          %s200 = sand.u32 %s78, 1
          %s201 = smul.addr %s200, 8
          %s202 = scalar_lea.vmem [#allocation5], %s201
          %s203 = sadd.s32 %s23, %s24
          %s204 = smul.u32 2, %s22
          %s206 = ssub.s32 128, 128
          %207 = vsyncadd %s199, %s206
          %s208 = smul.addr %s204, 2
          %s209 = sadd.s32 %s203, %s208
          %s210 = smul.addr %s209, 64
          %s211 = scalar_lea.hbm %s1, %s210
          %s212 = sshll.u32 %s202, 4
          %s213 = int_to_ptr.vmem [resolvable:$true] %s212
          %218 = dma.hbm_to_vmem [thread:$0]  %s211, 128, %s213, %s199, 128, 64, 4
        $region24: #{tpu_custom_call.1} parent=15 // pred_fallthru
          _
        // Predicated region
        $region25: #{tpu_custom_call.1} parent=15 // pred_check
          %p219 = pneg %p118
        $region26: #{tpu_custom_call.1} parent=15 // pred_check_branch
          %221 = sbr.rel (%p219) target = $region28
        $region27: #{tpu_custom_call.1} parent=15 // pred_region
          %s222 = sand.u32 %s108, 1
          %s223 = sand.u32 %s108, 1
          %s224 = smul.addr %s223, 2
          %s225 = scalar_lea.vmem [#allocation7], %s224
          %s226 = sadd.s32 %s23, %s24
          %s227 = smul.u32 2, %s22
          %s228 = smul.addr %s227, 2
          %s229 = sadd.s32 %s226, %s228
          %s230 = scalar_lea.vmem %s2, %s229
          // Predicated region
          $region29: #{tpu_custom_call.1} parent=27 // pred_check
            _
          $region30: #{tpu_custom_call.1} parent=27 // pred_check_branch
            %232 = sbr.rel (0) target = $region32
          $region31: #{tpu_custom_call.1} parent=27 // pred_region
            // Predicated region
            $region33: #{tpu_custom_call.1} parent=31 // pred_check
              _
            $region34: #{tpu_custom_call.1} parent=31 // pred_check_branch
              %234 = sbr.rel target = $region36
            $region35: #{tpu_custom_call.1} parent=31 // pred_region
              // Predicated region
              $region48: #{tpu_custom_call.1} parent=35 // pred_check
                _
              $region49: #{tpu_custom_call.1} parent=35 // pred_check_branch
                %251 = sbr.rel (0) target = $region51
              $region50: #{tpu_custom_call.1} parent=35 // pred_region
                loop: start=0, step=1, limit=1
                $region52: #{tpu_custom_call.1} parent=50 // loop_pre_header
                  _
                $region53: #{tpu_custom_call.1} parent=50 // loop_header
                  %s254 = sphi 0, %s258
                  %p255 = scmp.ge.s32.totalorder %s254, 1
                  %s259 = sphi %s230, %s230
                  %s260 = sphi %s225, %s225
                $region54: #{tpu_custom_call.1} parent=50 // loop_header_branch
                  %257 = sbr.rel (%p255) target = $region58
                $region55: #{tpu_custom_call.1} parent=50 // loop_body
                  %v261 = vld [vmem:[%s259] sm:$0x1]
                  %262 = vst [vmem:[%s260] sm:$0x1] %v261
                  %v263 = vld [vmem:[%s259 + $0x2] sm:$0x1]
                  %264 = vst [vmem:[%s260 + $0x1] sm:$0x1] %v263
                $region56: #{tpu_custom_call.1} parent=50 // loop_footer
                  %s258 = sadd.s32 1, %s254
                $region57: #{tpu_custom_call.1} parent=50 // loop_footer_branch
                  %253 = sbr.rel target = $region53
                $region58: #{tpu_custom_call.1} parent=50 // loop_exit
                  _
              $region51: #{tpu_custom_call.1} parent=35 // pred_fallthru
                _
            $region36: #{tpu_custom_call.1} parent=31 // pred_fallthru
              _
            // Predicated region
            $region37: #{tpu_custom_call.1} parent=31 // pred_check
              _
            $region38: #{tpu_custom_call.1} parent=31 // pred_check_branch
              %236 = sbr.rel (0) target = $region40
            $region39: #{tpu_custom_call.1} parent=31 // pred_region
              loop: start=0, step=1, limit=1
              $region41: #{tpu_custom_call.1} parent=39 // loop_pre_header
                _
              $region42: #{tpu_custom_call.1} parent=39 // loop_header
                %s239 = sphi 0, %s243
                %p240 = scmp.ge.s32.totalorder %s239, 1
                %s244 = sphi %s230, %s230
                %s245 = sphi %s225, %s225
              $region43: #{tpu_custom_call.1} parent=39 // loop_header_branch
                %242 = sbr.rel (%p240) target = $region47
              $region44: #{tpu_custom_call.1} parent=39 // loop_body
                %v246 = vld [vmem:[%s244] sm:$0x1]
                %247 = vst [vmem:[%s245] sm:$0x1] %v246
                %v248 = vld [vmem:[%s244 + $0x2] sm:$0x1]
                %249 = vst [vmem:[%s245 + $0x1] sm:$0x1] %v248
              $region45: #{tpu_custom_call.1} parent=39 // loop_footer
                %s243 = sadd.s32 1, %s239
              $region46: #{tpu_custom_call.1} parent=39 // loop_footer_branch
                %238 = sbr.rel target = $region42
              $region47: #{tpu_custom_call.1} parent=39 // loop_exit
                _
            $region40: #{tpu_custom_call.1} parent=31 // pred_fallthru
              _
          $region32: #{tpu_custom_call.1} parent=27 // pred_fallthru
            _
          %265 = vnop
        $region28: #{tpu_custom_call.1} parent=15 // pred_fallthru
          _
      $region16: #{tpu_custom_call.1} parent=5 // pred_fallthru
        _
      %p266 = scmp.le.s32.totalorder 1, %s15
      %p267 = scmp.lt.s32.totalorder %s15, 3
      %p268 = pnand %p266, %p267
      %p269 = pneg %p268
      // Predicated region
      $region59: #{tpu_custom_call.1} parent=5 // pred_check
        _
      $region60: #{tpu_custom_call.1} parent=5 // pred_check_branch
        %271 = sbr.rel (%p268) target = $region62
      $region61: #{tpu_custom_call.1} parent=5 // pred_region
        %s272 = ssub.s32 %s15, 1
        %s273 = sand.u32 %s51, 1
        %s274 = scalar_lea.sflag [#allocation4], %s273
        %s275 = sand.u32 %s51, 1
        %s276 = smul.addr %s275, 8
        %s277 = scalar_lea.vmem [#allocation3], %s276
        // Predicated region
        $region63: #{tpu_custom_call.1} parent=61 // pred_check
          %p278 = pneg %p64
        $region64: #{tpu_custom_call.1} parent=61 // pred_check_branch
          %280 = sbr.rel (%p278) target = $region66
        $region65: #{tpu_custom_call.1} parent=61 // pred_region
          %281 = dma.done %s274, 128
        $region66: #{tpu_custom_call.1} parent=61 // pred_fallthru
          _
        %s282 = sand.u32 %s81, 1
        %s283 = scalar_lea.sflag [#allocation6], %s282
        %s284 = sand.u32 %s81, 1
        %s285 = smul.addr %s284, 8
        %s286 = scalar_lea.vmem [#allocation5], %s285
        // Predicated region
        $region67: #{tpu_custom_call.1} parent=61 // pred_check
          %p287 = pneg %p94
        $region68: #{tpu_custom_call.1} parent=61 // pred_check_branch
          %289 = sbr.rel (%p287) target = $region70
        $region69: #{tpu_custom_call.1} parent=61 // pred_region
          %290 = dma.done %s283, 128
        $region70: #{tpu_custom_call.1} parent=61 // pred_fallthru
          _
        %s291 = sand.u32 %s111, 1
        %s292 = sand.u32 %s111, 1
        %s293 = smul.addr %s292, 2
        %s294 = scalar_lea.vmem [#allocation7], %s293
        // Predicated region
        $region71: #{tpu_custom_call.1} parent=61 // pred_check
          %p295 = pneg %p124
        $region72: #{tpu_custom_call.1} parent=61 // pred_check_branch
          %297 = sbr.rel (%p295) target = $region74
        $region73: #{tpu_custom_call.1} parent=61 // pred_region
          _
        $region74: #{tpu_custom_call.1} parent=61 // pred_fallthru
          _
        %s298 = sand.u32 %s51, 1
        %s299 = scalar_lea.sflag [#allocation4], %s298
        %s300 = sand.u32 %s51, 1
        %s301 = smul.addr %s300, 8
        %s302 = scalar_lea.vmem [#allocation3], %s301
        %p303 = pneg %p64
        %p304 = pneg %p61
        %s305 = sand.u32 %s81, 1
        %s306 = scalar_lea.sflag [#allocation6], %s305
        %s307 = sand.u32 %s81, 1
        %s308 = smul.addr %s307, 8
        %s309 = scalar_lea.vmem [#allocation5], %s308
        %p310 = pneg %p94
        %p311 = pneg %p91
        %s312 = sand.u32 %s111, 1
        %s313 = sand.u32 %s111, 1
        %s314 = smul.addr %s313, 2
        %s315 = scalar_lea.vmem [#allocation7], %s314
        %p316 = pneg %p124
        %p317 = pneg %p121
        %p318 = pneg %p152
        %p319 = pneg %p149
        %s320 = sand.u32 %s139, 1
        %s321 = sand.u32 %s139, 1
        %s322 = smul.addr %s321, 8
        %s323 = scalar_lea.vmem [#allocation8], %s322
        %s324 = sadd.s32 %s26, %s27
        %s325 = smul.u32 2, %s25
        %s326 = sadd.s32 %s26, %s27
        %s327 = smul.u32 2, %s25
        %s328 = sadd.s32 %s26, %s27
        %s329 = smul.u32 2, %s25
        %s330 = smul.u32 2, %s25
        %p331 = scmp.eq.s32.totalorder %s27, 0
        // Predicated region
        $region75: #{tpu_custom_call.1} parent=61 // pred_check
          %p332 = pneg %p331
        $region76: #{tpu_custom_call.1} parent=61 // pred_check_branch
          %334 = sbr.rel (%p332) target = $region78
        $region77: #{tpu_custom_call.1} parent=61 // pred_region
          %vm335 = vcmask 3072
          %336 = vst.msk [vmem:[#allocation2] sm:$0xf] %vm335, 0.0
          %337 = vst.msk [vmem:[#allocation2 + $0x4] sm:$0xf] %vm335, 0.0
        $region78: #{tpu_custom_call.1} parent=61 // pred_fallthru
          _
        %v338 = vld [vmem:[%s277] sm:$0xf]
        %v339 = vld [vmem:[%s277 + $0x4] sm:$0xf]
        %v340 = vld [vmem:[%s286] sm:$0xf]
        %v341 = vld [vmem:[%s286 + $0x4] sm:$0xf]
        %v342 = vld [vmem:[%s294] sm:$0x1]
        %v343 = vld [vmem:[%s294 + $0x1] sm:$0x1]
        %v344 = vsub.f32 %v338, %v340
        %v345 = vsub.f32 %v339, %v341
        %v346 = vmul.f32 %v344, %v344
        %v347 = vmul.f32 %v345, %v345
        %v350 = vlaneseq
        %v351 = vshrl.u32 %v350, 7
        %v352 = vsub.s32 0, %v351
        %v353 = vrot.slane %v342, %v352
        %v354 = vlaneseq
        %v355 = vshrl.u32 %v354, 7
        %v356 = vsub.s32 0, %v355
        %v357 = vrot.slane %v343, %v356
        %v360 = vmul.f32 %v346, %v353
        %v361 = vmul.f32 %v347, %v357
        %v362 = vld [vmem:[#allocation2] sm:$0xf]
        %v363 = vld [vmem:[#allocation2 + $0x4] sm:$0xf]
        %vm364 = vcmask 1043456
        %v365 = vsel %vm364, %v360, 0.0
        %366 = vadd.xlane.f32.xlu0 %v365
        %v367 = vpop.xlane.xlu0 %366
        %v368 = vsel %vm364, %v361, 0.0
        %369 = vadd.xlane.f32.xlu0 %v368
        %v370 = vpop.xlane.xlu0 %369
        %v371 = vadd.f32 %v362, %v367
        %v372 = vadd.f32 %v363, %v370
        %vm373 = vcmask 3072
        %374 = vst.msk [vmem:[#allocation2] sm:$0xf] %vm373, %v371
        %375 = vst.msk [vmem:[#allocation2 + $0x4] sm:$0xf] %vm373, %v372
        // Predicated region
        $region79: #{tpu_custom_call.1} parent=61 // pred_check
          %p376 = pneg %p331
        $region80: #{tpu_custom_call.1} parent=61 // pred_check_branch
          %378 = sbr.rel (%p376) target = $region82
        $region81: #{tpu_custom_call.1} parent=61 // pred_region
          %v379 = vld [vmem:[#allocation2] sm:$0xf]
          %v380 = vld [vmem:[#allocation2 + $0x4] sm:$0xf]
          %381 = vst.msk [vmem:[%s323] sm:$0xf] %vm373, %v379
          %382 = vst.msk [vmem:[%s323 + $0x4] sm:$0xf] %vm373, %v380
        $region82: #{tpu_custom_call.1} parent=61 // pred_fallthru
          _
        %s383 = sand.u32 %s139, 1
        %s384 = sand.u32 %s139, 1
        %s385 = smul.addr %s384, 8
        %s386 = scalar_lea.vmem [#allocation8], %s385
        // Predicated region
        $region83: #{tpu_custom_call.1} parent=61 // pred_check
          %p387 = pneg %p149
        $region84: #{tpu_custom_call.1} parent=61 // pred_check_branch
          %389 = sbr.rel (%p387) target = $region86
        $region85: #{tpu_custom_call.1} parent=61 // pred_region
          %s390 = smul.u32 2, %s25
          %s391 = smul.addr %s390, 2
          %s392 = sadd.s32 %s26, %s391
          %s393 = smul.addr %s392, 4
          %s394 = scalar_lea.vmem %s3, %s393
          // Predicated region
          $region87: #{tpu_custom_call.1} parent=85 // pred_check
            _
          $region88: #{tpu_custom_call.1} parent=85 // pred_check_branch
            %396 = sbr.rel (0) target = $region90
          $region89: #{tpu_custom_call.1} parent=85 // pred_region
            // Predicated region
            $region91: #{tpu_custom_call.1} parent=89 // pred_check
              _
            $region92: #{tpu_custom_call.1} parent=89 // pred_check_branch
              %398 = sbr.rel target = $region94
            $region93: #{tpu_custom_call.1} parent=89 // pred_region
              // Predicated region
              $region106: #{tpu_custom_call.1} parent=93 // pred_check
                _
              $region107: #{tpu_custom_call.1} parent=93 // pred_check_branch
                %415 = sbr.rel (0) target = $region109
              $region108: #{tpu_custom_call.1} parent=93 // pred_region
                loop: start=0, step=1, limit=1
                $region110: #{tpu_custom_call.1} parent=108 // loop_pre_header
                  _
                $region111: #{tpu_custom_call.1} parent=108 // loop_header
                  %s417 = sphi 0, %s421
                  %p418 = scmp.ge.s32.totalorder %s417, 1
                  %s422 = sphi %s386, %s386
                  %s423 = sphi %s394, %s394
                $region112: #{tpu_custom_call.1} parent=108 // loop_header_branch
                  %420 = sbr.rel (%p418) target = $region116
                $region113: #{tpu_custom_call.1} parent=108 // loop_body
                  _
                $region114: #{tpu_custom_call.1} parent=108 // loop_footer
                  %s421 = sadd.s32 1, %s417
                $region115: #{tpu_custom_call.1} parent=108 // loop_footer_branch
                  %416 = sbr.rel target = $region111
                $region116: #{tpu_custom_call.1} parent=108 // loop_exit
                  _
                loop: start=0, step=1, limit=1
                $region117: #{tpu_custom_call.1} parent=108 // loop_pre_header
                  _
                $region118: #{tpu_custom_call.1} parent=108 // loop_header
                  %s426 = sphi 0, %s430
                  %p427 = scmp.ge.s32.totalorder %s426, 1
                  %s431 = sphi %s386, %s386
                  %s432 = sphi %s394, %s394
                $region119: #{tpu_custom_call.1} parent=108 // loop_header_branch
                  %429 = sbr.rel (%p427) target = $region123
                $region120: #{tpu_custom_call.1} parent=108 // loop_body
                  %v433 = vld [vmem:[%s431] sm:$0xf]
                  %434 = vst [vmem:[%s432] sm:$0xf] %v433
                  %v435 = vld [vmem:[%s431 + $0x4] sm:$0xf]
                  %436 = vst [vmem:[%s432 + $0x8] sm:$0xf] %v435
                $region121: #{tpu_custom_call.1} parent=108 // loop_footer
                  %s430 = sadd.s32 1, %s426
                $region122: #{tpu_custom_call.1} parent=108 // loop_footer_branch
                  %425 = sbr.rel target = $region118
                $region123: #{tpu_custom_call.1} parent=108 // loop_exit
                  _
              $region109: #{tpu_custom_call.1} parent=93 // pred_fallthru
                _
            $region94: #{tpu_custom_call.1} parent=89 // pred_fallthru
              _
            // Predicated region
            $region95: #{tpu_custom_call.1} parent=89 // pred_check
              _
            $region96: #{tpu_custom_call.1} parent=89 // pred_check_branch
              %400 = sbr.rel (0) target = $region98
            $region97: #{tpu_custom_call.1} parent=89 // pred_region
              loop: start=0, step=1, limit=1
              $region99: #{tpu_custom_call.1} parent=97 // loop_pre_header
                _
              $region100: #{tpu_custom_call.1} parent=97 // loop_header
                %s403 = sphi 0, %s407
                %p404 = scmp.ge.s32.totalorder %s403, 1
                %s408 = sphi %s386, %s386
                %s409 = sphi %s394, %s394
              $region101: #{tpu_custom_call.1} parent=97 // loop_header_branch
                %406 = sbr.rel (%p404) target = $region105
              $region102: #{tpu_custom_call.1} parent=97 // loop_body
                %v410 = vld [vmem:[%s408] sm:$0xf]
                %411 = vst [vmem:[%s409] sm:$0xf] %v410
                %v412 = vld [vmem:[%s408 + $0x4] sm:$0xf]
                %413 = vst [vmem:[%s409 + $0x8] sm:$0xf] %v412
              $region103: #{tpu_custom_call.1} parent=97 // loop_footer
                %s407 = sadd.s32 1, %s403
              $region104: #{tpu_custom_call.1} parent=97 // loop_footer_branch
                %402 = sbr.rel target = $region100
              $region105: #{tpu_custom_call.1} parent=97 // loop_exit
                _
            $region98: #{tpu_custom_call.1} parent=89 // pred_fallthru
              _
          $region90: #{tpu_custom_call.1} parent=85 // pred_fallthru
            _
          %437 = vnop
        $region86: #{tpu_custom_call.1} parent=61 // pred_fallthru
          _
      $region62: #{tpu_custom_call.1} parent=5 // pred_fallthru
        _
      %p438 = scmp.le.s32.totalorder 2, %s15
      // Predicated region
      $region124: #{tpu_custom_call.1} parent=5 // pred_check
        %p439 = pneg %p438
      $region125: #{tpu_custom_call.1} parent=5 // pred_check_branch
        %441 = sbr.rel (%p439) target = $region127
      $region126: #{tpu_custom_call.1} parent=5 // pred_region
        %s442 = ssub.s32 %s15, 2
        // Predicated region
        $region128: #{tpu_custom_call.1} parent=126 // pred_check
          %p443 = pneg %p155
        $region129: #{tpu_custom_call.1} parent=126 // pred_check_branch
          %445 = sbr.rel (%p443) target = $region131
        $region130: #{tpu_custom_call.1} parent=126 // pred_region
          %s446 = sand.u32 %s140, 1
          %s447 = sand.u32 %s140, 1
          %s448 = smul.addr %s447, 8
          %s449 = scalar_lea.vmem [#allocation8], %s448
        $region131: #{tpu_custom_call.1} parent=126 // pred_fallthru
          _
      $region127: #{tpu_custom_call.1} parent=5 // pred_fallthru
        _
    $region6: #{tpu_custom_call.1} parent=1 // loop_footer
      %s19 = sadd.s32 1, %s15
    $region7: #{tpu_custom_call.1} parent=1 // loop_footer_branch
      %14 = sbr.rel target = $region3
    $region8: #{tpu_custom_call.1} parent=1 // loop_exit
      _
    %450 = vsyncpa [#allocation4], 1
    %s451 = scalar_lea.sflag [#allocation4], 1
    %452 = vsyncpa %s451, 1
    %453 = vsyncpa [#allocation6], 1
    %s454 = scalar_lea.sflag [#allocation6], 1
    %455 = vsyncpa %s454, 1

</llo_original>
